<compile_context>
chip_gen: v6e
topology: v6e:2x2x1
jax: 0.10.0
libtpu: 0.0.40
codegen_flags: <defaults>
</compile_context>

<pallas_src>
import functools

import jax
import jax.numpy as jnp
from jax.experimental import pallas as pl
from jax.experimental.pallas import tpu as pltpu


def _cdiv(a, b):
    return (a + b - 1) // b


def _round_up(x, m):
    return _cdiv(x, m) * m


def _vmem_capacity_bytes():
    """Per-TensorCore VMEM capacity; conservative (v7x) fallback if unqueryable."""
    try:
        info = pltpu.get_tpu_info()
        cap = getattr(info, "vmem_capacity_bytes", None)
        if cap:
            return int(cap)
    except Exception:
        pass
    return 64 << 20


def _label_smoothing_kernel(pred_ref, tgt_ref, out_ref, *,
                            smoothing, confidence, n_classes, tile_n, n_valid,
                            masked):
    """One batch tile: accumulate the tile's summed label-smoothed NLL into out_ref."""
    i = pl.program_id(0)

    @pl.when(i == 0)
    def _init():
        out_ref[...] = jnp.zeros_like(out_ref)

    # log-softmax pieces along the class (lane) axis
    x = pred_ref[...].astype(jnp.float32)                           # (tile_n, C)
    m = jnp.max(x, axis=-1, keepdims=True)                          # (tile_n, 1)
    z = x - m
    lse = jnp.log(jnp.sum(jnp.exp(z), axis=-1, keepdims=True))      # (tile_n, 1)

    # sum over classes of logp = sum(z) - C * lse   (logp never materialized)
    sum_logp = jnp.sum(z, axis=-1, keepdims=True) - jnp.float32(n_classes) * lse

    # logp at the target class via a masked row-reduce; target streamed with this tile
    tgt = tgt_ref[...]                                              # (tile_n, 1) int32
    col = jax.lax.broadcasted_iota(jnp.int32, z.shape, 1)
    z_tgt = jnp.sum(jnp.where(col == tgt, z, 0.0), axis=-1, keepdims=True)
    logp_tgt = z_tgt - lse                                          # (tile_n, 1)

    # per-row loss: -(confidence - s) * logp[target] - s * sum_c logp[c]
    sval = jnp.float32(smoothing / (n_classes - 1))
    row_loss = (-(jnp.float32(confidence) - sval) * logp_tgt - sval * sum_logp)

    if masked:  # static flag: only traced when the batch was padded wrapper-side
        row = jax.lax.broadcasted_iota(jnp.int32, row_loss.shape, 0) + i * tile_n
        row_loss = jnp.where(row < n_valid, row_loss, 0.0)

    # tile's contribution to the total loss (resident accumulator, written back at end)
    out_ref[...] += jnp.sum(row_loss, keepdims=True)


def label_smoothing_loss(pred, target, *, classes, smoothing=0.0,
                         tile_n=None, pred_buffers=None):
    """Equivalent of LabelSmoothingLoss(classes, smoothing).forward(pred, target)."""
    N, C = pred.shape
    assert C == classes

    itemsize = jnp.dtype(pred.dtype).itemsize
    sublane = max(8, 32 // itemsize)          # 8 for f32, 16 for bf16, 32 for int8/fp8

    cap = _vmem_capacity_bytes()

    if tile_n is None:
        # Working-set budget ~45% of VMEM: double-buffered pred tile + ~4 block-sized
        # f32 temporaries (upcast / z / exp / iota / select) + lane-padded target block
        # + small per-row vectors.
        work_budget = int(cap * 0.45)
        per_row = C * (2 * itemsize + 4 * 4) + 2 * 128 * 4 + 2048
        tile_n = max(sublane, min(work_budget // max(per_row, 1), 8192))
    tile_n = max(sublane, (tile_n // sublane) * sublane)
    tile_n = min(tile_n, _round_up(N, sublane))

    # Balance tile sizes across the fixed step count so padding stays minimal.
    g = _cdiv(N, tile_n)
    tile_n = _round_up(_cdiv(N, g), sublane)
    n_pad = g * tile_n
    masked = n_pad != N

    tgt2d = target.astype(jnp.int32).reshape(N, 1)
    if masked:
        pred_in = jnp.pad(pred, ((0, n_pad - N), (0, 0)))
        tgt_in = jnp.pad(tgt2d, ((0, n_pad - N), (0, 0)))
    else:
        pred_in, tgt_in = pred, tgt2d

    confidence = 1.0 - smoothing
    kernel = functools.partial(
        _label_smoothing_kernel,
        smoothing=float(smoothing),
        confidence=float(confidence),
        n_classes=classes,
        tile_n=tile_n,
        n_valid=N,
        masked=masked,
    )

    # VMEM estimate including temporaries; clamp limit to 75% of capacity (48 MiB on v7x).
    need = (2 * tile_n * C * itemsize          # double-buffered pred tile
            + 4 * tile_n * C * 4               # block-sized f32/i32 temporaries
            + 2 * tile_n * 128 * 4             # lane-padded target blocks
            + (2 << 20))                       # slack for small vectors / runtime
    vmem_limit = int(min(cap * 3 // 4, max(need * 3 // 2, 32 << 20)))

    pred_spec_kwargs = {}
    if pred_buffers is not None:               # deeper prefetch only if DMA is exposed
        pred_spec_kwargs["pipeline_mode"] = pl.Buffered(int(pred_buffers))

    total = pl.pallas_call(
        kernel,
        out_shape=jax.ShapeDtypeStruct((1, 1), jnp.float32),
        grid_spec=pltpu.PrefetchScalarGridSpec(
            num_scalar_prefetch=0,
            grid=(g,),
            in_specs=[
                pl.BlockSpec((tile_n, C), lambda i: (i, 0), **pred_spec_kwargs),
                pl.BlockSpec((tile_n, 1), lambda i: (i, 0)),
            ],
            out_specs=pl.BlockSpec((1, 1), lambda i: (0, 0)),
        ),
        compiler_params=pltpu.CompilerParams(
            # grid axis carries the resident loss accumulator -> reduction axis
            dimension_semantics=("arbitrary",),
            vmem_limit_bytes=vmem_limit,
        ),
    )(pred_in, tgt_in)

    # tiny final step (mean over the batch) done in XLA
    return total[0, 0] / jnp.float32(N)


if __name__ == "__main__":
    key = jax.random.PRNGKey(0)

    def ref_loss(pred, target, classes, smoothing):
        # pure-JAX reference mirroring the PyTorch forward
        logp = jax.nn.log_softmax(pred.astype(jnp.float32), axis=-1)
        true_dist = jnp.full(pred.shape, smoothing / (classes - 1), dtype=jnp.float32)
        true_dist = true_dist.at[jnp.arange(pred.shape[0]), target].set(1.0 - smoothing)
        return jnp.mean(jnp.sum(-true_dist * logp, axis=-1))

    k1, k2, k3, k4 = jax.random.split(key, 4)

    # Case 1: awkward batch size (exercises wrapper-side padding + in-kernel row mask).
    N1, C1, sm1 = 20, 32, 0.1
    pred1 = jax.random.normal(k1, (N1, C1), dtype=jnp.float32)
    tgt1 = jax.random.randint(k2, (N1,), 0, C1, dtype=jnp.int32)
    out1 = jax.block_until_ready(
        label_smoothing_loss(pred1, tgt1, classes=C1, smoothing=sm1))
    ref1 = float(ref_loss(pred1, tgt1, C1, sm1))
    assert abs(float(out1) - ref1) < 5e-5, (float(out1), ref1)

    # Case 2: multi-step grid (exercises the resident accumulator across tiles).
    N2, C2, sm2 = 32, 48, 0.2
    pred2 = jax.random.normal(k3, (N2, C2), dtype=jnp.float32)
    tgt2 = jax.random.randint(k4, (N2,), 0, C2, dtype=jnp.int32)
    out2 = jax.block_until_ready(
        label_smoothing_loss(pred2, tgt2, classes=C2, smoothing=sm2, tile_n=8))
    ref2 = float(ref_loss(pred2, tgt2, C2, sm2))
    assert abs(float(out2) - ref2) < 5e-5, (float(out2), ref2)

    print("KERNEL_OK")
</pallas_src>

<mosaic_0001>
module attributes {stable_mosaic.version = 11 : i64} {
  func.func @_label_smoothing_kernel(%arg0: i32, %arg1: memref<24x32xf32, #tpu.memory_space<vmem>>, %arg2: memref<24x1xi32, #tpu.memory_space<vmem>>, %arg3: memref<1x1xf32, #tpu.memory_space<vmem>>) attributes {dimension_semantics = [#tpu.dimension_semantics<arbitrary>], iteration_bounds = array<i64: 1>, scalar_prefetch = 0 : i64, scratch_operands = 0 : i64, tpu.core_type = #tpu.core_type<tc>, window_params = [{transform_indices = @transform_0, window_bounds = array<i64: 24, 32>}, {transform_indices = @transform_1, window_bounds = array<i64: 24, 1>}, {pipeline_mode = #tpu.pipeline_mode<synchronous>, transform_indices = @transform_2, window_bounds = array<i64: 1, 1>}]} {
    %c0_i32 = arith.constant 0 : i32
    %0 = arith.cmpi eq, %arg0, %c0_i32 : i32
    %1 = arith.extui %0 : i1 to i32
    %c0_i32_0 = arith.constant 0 : i32
    %2 = arith.cmpi ne, %1, %c0_i32_0 : i32
    scf.if %2 {
      %cst_19 = arith.constant 0.000000e+00 : f32
      %49 = vector.broadcast %cst_19 : f32 to vector<1x1xf32>
      %c0_20 = arith.constant 0 : index
      %c0_21 = arith.constant 0 : index
      %50 = vector.load %arg3[%c0_20, %c0_21] : memref<1x1xf32, #tpu.memory_space<vmem>>, vector<1x1xf32>
      tpu.vector_store %arg3[%c0_20, %c0_21], %49 {strides = array<i32>} : memref<1x1xf32, #tpu.memory_space<vmem>>, vector<1x1xf32>,
    } else {
    }
    %c0 = arith.constant 0 : index
    %c0_1 = arith.constant 0 : index
    %3 = vector.load %arg1[%c0, %c0_1] : memref<24x32xf32, #tpu.memory_space<vmem>>, vector<24x32xf32>
    %cst = arith.constant dense<0xFF800000> : vector<24xf32>
    %4 = vector.multi_reduction <maximumf>, %3, %cst [1] : vector<24x32xf32> to vector<24xf32>
    %5 = vector.shape_cast %4 : vector<24xf32> to vector<24x1xf32>
    %6 = vector.broadcast %5 : vector<24x1xf32> to vector<24x32xf32>
    %7 = arith.subf %3, %6 : vector<24x32xf32>
    %8 = math.exp %7 : vector<24x32xf32>
    %cst_2 = arith.constant dense<0.000000e+00> : vector<24xf32>
    %9 = vector.multi_reduction <add>, %8, %cst_2 [1] : vector<24x32xf32> to vector<24xf32>
    %10 = vector.shape_cast %9 : vector<24xf32> to vector<24x1xf32>
    %11 = math.log %10 : vector<24x1xf32>
    %cst_3 = arith.constant dense<0.000000e+00> : vector<24xf32>
    %12 = vector.multi_reduction <add>, %7, %cst_3 [1] : vector<24x32xf32> to vector<24xf32>
    %13 = vector.shape_cast %12 : vector<24xf32> to vector<24x1xf32>
    %cst_4 = arith.constant 3.200000e+01 : f32
    %14 = vector.broadcast %cst_4 : f32 to vector<24x1xf32>
    %15 = arith.mulf %14, %11 : vector<24x1xf32>
    %16 = arith.subf %13, %15 : vector<24x1xf32>
    %c0_5 = arith.constant 0 : index
    %c0_6 = arith.constant 0 : index
    %17 = vector.load %arg2[%c0_5, %c0_6] : memref<24x1xi32, #tpu.memory_space<vmem>>, vector<24x1xi32>
    %18 = tpu.iota {dimensions = array<i32: 1>} : vector<24x32xi32>
    %19 = vector.broadcast %17 : vector<24x1xi32> to vector<24x32xi32>
    %20 = arith.cmpi eq, %18, %19 : vector<24x32xi32>
    %cst_7 = arith.constant 0.000000e+00 : f32
    %21 = vector.broadcast %cst_7 : f32 to vector<24x32xf32>
    %22 = arith.select %20, %7, %21 : vector<24x32xi1>, vector<24x32xf32>
    %cst_8 = arith.constant dense<0.000000e+00> : vector<24xf32>
    %23 = vector.multi_reduction <add>, %22, %cst_8 [1] : vector<24x32xf32> to vector<24xf32>
    %24 = vector.shape_cast %23 : vector<24xf32> to vector<24x1xf32>
    %25 = arith.subf %24, %11 : vector<24x1xf32>
    %cst_9 = arith.constant 0.899999976 : f32
    %cst_10 = arith.constant 0.0032258064 : f32
    %26 = arith.subf %cst_9, %cst_10 : f32
    %cst_11 = arith.constant 0.000000e+00 : f32
    %27 = arith.subf %cst_11, %26 : f32
    %28 = vector.broadcast %27 : f32 to vector<24x1xf32>
    %29 = arith.mulf %28, %25 : vector<24x1xf32>
    %cst_12 = arith.constant 0.0032258064 : f32
    %30 = vector.broadcast %cst_12 : f32 to vector<24x1xf32>
    %31 = arith.mulf %30, %16 : vector<24x1xf32>
    %32 = arith.subf %29, %31 : vector<24x1xf32>
    %33 = tpu.iota {dimensions = array<i32: 0>} : vector<24x1xi32>
    %c24_i32 = arith.constant 24 : i32
    %34 = arith.muli %arg0, %c24_i32 : i32
    %35 = vector.broadcast %34 : i32 to vector<24x1xi32>
    %36 = arith.addi %33, %35 : vector<24x1xi32>
    %c20_i32 = arith.constant 20 : i32
    %37 = vector.broadcast %c20_i32 : i32 to vector<24x1xi32>
    %38 = arith.cmpi slt, %36, %37 : vector<24x1xi32>
    %cst_13 = arith.constant 0.000000e+00 : f32
    %39 = vector.broadcast %cst_13 : f32 to vector<24x1xf32>
    %40 = arith.select %38, %32, %39 : vector<24x1xi1>, vector<24x1xf32>
    %c0_14 = arith.constant 0 : index
    %c0_15 = arith.constant 0 : index
    %41 = vector.load %arg3[%c0_14, %c0_15] : memref<1x1xf32, #tpu.memory_space<vmem>>, vector<1x1xf32>
    %42 = vector.shape_cast %40 : vector<24x1xf32> to vector<1x24x1xf32>
    %cst_16 = arith.constant dense<0.000000e+00> : vector<1xf32>
    %43 = vector.multi_reduction <add>, %42, %cst_16 [1, 2] : vector<1x24x1xf32> to vector<1xf32>
    %44 = vector.shape_cast %43 : vector<1xf32> to vector<1x1x1xf32>
    %45 = vector.extract %44[0, 0, 0] : f32 from vector<1x1x1xf32>
    %46 = vector.broadcast %45 : f32 to vector<1x1xf32>
    %47 = arith.addf %41, %46 : vector<1x1xf32>
    %c0_17 = arith.constant 0 : index
    %c0_18 = arith.constant 0 : index
    %48 = vector.load %arg3[%c0_17, %c0_18] : memref<1x1xf32, #tpu.memory_space<vmem>>, vector<1x1xf32>
    tpu.vector_store %arg3[%c0_17, %c0_18], %47 {strides = array<i32>} : memref<1x1xf32, #tpu.memory_space<vmem>>, vector<1x1xf32>,
    return
  }
  func.func @transform_0(%arg0: i32) -> (i32, i32) {
    %c0_i32 = arith.constant 0 : i32
    %c0_i32_0 = arith.constant 0 : i32
    return %arg0, %c0_i32 : i32, i32
  }
  func.func @transform_1(%arg0: i32) -> (i32, i32) {
    %c0_i32 = arith.constant 0 : i32
    %c0_i32_0 = arith.constant 0 : i32
    return %arg0, %c0_i32 : i32, i32
  }
  func.func @transform_2(%arg0: i32) -> (i32, i32) {
    %c0_i32 = arith.constant 0 : i32
    %c0_i32_0 = arith.constant 0 : i32
    %c0_i32_1 = arith.constant 0 : i32
    return %c0_i32, %c0_i32_0 : i32, i32
  }
}

</mosaic_0001>

<llo_original>
// kernel: tpu_custom_call.1
$region0: #{tpu_custom_call.1}
  #allocation0 [shape = 'u32[]', space=smem, size = 0x4, offset = 0x4, fixed_abs, tag = 'smem constant byte address 0x4 - core index']
  #allocation1 [shape = 'u32[144,128]{1,0:T(1,128)}', space=vmem, size = 0x12000, scoped, tag = 'internal scratch']
  %s0 = inlined_call_operand.vmem [shape: f32[24,32], index: 0, kind: input, shape index: {}]
  %s1 = inlined_call_operand.vmem [shape: s32[24,1], index: 1, kind: input, shape index: {}]
  %s2 = inlined_call_operand.hbm [shape: f32[1,1], index: 2, kind: output, shape index: {}]
  %s3 = sld [smem:[#allocation0]]
  $region22: #{tpu_custom_call.1} parent=0
    _
  %s5 = ssub.s32 1, %s3
  %s6 = scalar_select 0, %s5, %s3
  $region1: #{tpu_custom_call.1} parent=0
    #allocation2 [shape = 'u8[512]{0}', space=vmem, size = 0x400, scoped, tag = 'output window, operand 0, single buffered']
    #allocation3 [shape = 's32[1]{0}', space=sflag, size = 0x4, scoped, tag = 'scoped memory for tpu_custom_call.1']
    %7 = vsyncpa [#allocation3], 0
    // Predicated region
    $region2: #{tpu_custom_call.1} parent=1 // pred_check
      _
    $region3: #{tpu_custom_call.1} parent=1 // pred_check_branch
      %9 = sbr.rel (0) target = $region5
    $region4: #{tpu_custom_call.1} parent=1 // pred_region
      _
    $region5: #{tpu_custom_call.1} parent=1 // pred_fallthru
      _
    // Predicated region
    $region6: #{tpu_custom_call.1} parent=1 // pred_check
      _
    $region7: #{tpu_custom_call.1} parent=1 // pred_check_branch
      %11 = sbr.rel (0) target = $region9
    $region8: #{tpu_custom_call.1} parent=1 // pred_region
      _
    $region9: #{tpu_custom_call.1} parent=1 // pred_fallthru
      _
    %p12 = scmp.eq.s32.totalorder 0, 0
    // Predicated region
    $region10: #{tpu_custom_call.1} parent=1 // pred_check
      %p13 = pneg %p12
    $region11: #{tpu_custom_call.1} parent=1 // pred_check_branch
      %15 = sbr.rel (%p13) target = $region13
    $region12: #{tpu_custom_call.1} parent=1 // pred_region
      %vm16 = vcmask 0
      %17 = vst.msk [vmem:[#allocation2] sm:$0x1] %vm16, 0.0
    $region13: #{tpu_custom_call.1} parent=1 // pred_fallthru
      _
    %v18 = vld [vmem:[%s0] sm:$0xff]
    %v19 = vld [vmem:[%s0 + $0x8] sm:$0xff]
    %v20 = vld [vmem:[%s0 + $0x10] sm:$0xff]
    %vm21 = vcmask 261120
    %v22 = vsel %vm21, %v18, -inf
    %23 = vmax.xlane.f32.xlu0 %v22
    %v24 = vpop.xlane.xlu0 %23
    %v25 = vsel %vm21, %v19, -inf
    %26 = vmax.xlane.f32.xlu0 %v25
    %v27 = vpop.xlane.xlu0 %26
    %v28 = vsel %vm21, %v20, -inf
    %29 = vmax.xlane.f32.xlu0 %v28
    %v30 = vpop.xlane.xlu0 %29
    %v31 = vsub.f32 %v18, %v24
    %v32 = vsub.f32 %v19, %v27
    %v33 = vsub.f32 %v20, %v30
    %v34 = vmul.f32 %v31, 1.442695
    %v35 = vpow.pop %v34
    %v36 = vmul.f32 %v32, 1.442695
    %v37 = vpow.pop %v36
    %v38 = vmul.f32 %v33, 1.442695
    %v39 = vpow.pop %v38
    %v40 = vsel %vm21, %v35, 0.0
    %41 = vadd.xlane.f32.xlu0 %v40
    %v42 = vpop.xlane.xlu0 %41
    %v43 = vsel %vm21, %v37, 0.0
    %44 = vadd.xlane.f32.xlu0 %v43
    %v45 = vpop.xlane.xlu0 %44
    %v46 = vsel %vm21, %v39, 0.0
    %47 = vadd.xlane.f32.xlu0 %v46
    %v48 = vpop.xlane.xlu0 %47
    %v49 = vlog2.pop %v42
    %v50 = vmul.f32 %v49, 0.6931472
    %v51 = vlog2.pop %v45
    %v52 = vmul.f32 %v51, 0.6931472
    %v53 = vlog2.pop %v48
    %v54 = vmul.f32 %v53, 0.6931472
    %v55 = vsel %vm21, %v31, 0.0
    %56 = vadd.xlane.f32.xlu0 %v55
    %v57 = vpop.xlane.xlu0 %56
    %v58 = vsel %vm21, %v32, 0.0
    %59 = vadd.xlane.f32.xlu0 %v58
    %v60 = vpop.xlane.xlu0 %59
    %v61 = vsel %vm21, %v33, 0.0
    %62 = vadd.xlane.f32.xlu0 %v61
    %v63 = vpop.xlane.xlu0 %62
    %v64 = vmul.f32 %v50, 32.0
    %v65 = vmul.f32 %v52, 32.0
    %v66 = vmul.f32 %v54, 32.0
    %v67 = vsub.f32 %v57, %v64
    %v68 = vsub.f32 %v60, %v65
    %v69 = vsub.f32 %v63, %v66
    %v70 = vld [vmem:[%s1] sm:$0xff]
    %v71 = vld [vmem:[%s1 + $0x8] sm:$0xff]
    %v72 = vld [vmem:[%s1 + $0x10] sm:$0xff]
    %v73 = vlaneseq
    %v74 = vand.u32 %v73, 127
    %75 = vset.pattern.permute.xlu0 0
    %76 = vperm.xlu0 %75, %v70
    %v77 = vpop.permute.xlu0 %76
    %78 = vset.pattern.permute.xlu0 0
    %79 = vperm.xlu0 %78, %v71
    %v80 = vpop.permute.xlu0 %79
    %81 = vset.pattern.permute.xlu0 0
    %82 = vperm.xlu0 %81, %v72
    %v83 = vpop.permute.xlu0 %82
    %vm84 = vcmp.eq.s32.totalorder %v74, %v77
    %vm85 = vcmp.eq.s32.totalorder %v74, %v80
    %vm86 = vcmp.eq.s32.totalorder %v74, %v83
    %v87 = vsel %vm84, %v31, 0.0
    %v88 = vsel %vm85, %v32, 0.0
    %v89 = vsel %vm86, %v33, 0.0
    %v90 = vsel %vm21, %v87, 0.0
    %91 = vadd.xlane.f32.xlu0 %v90
    %v92 = vpop.xlane.xlu0 %91
    %v93 = vsel %vm21, %v88, 0.0
    %94 = vadd.xlane.f32.xlu0 %v93
    %v95 = vpop.xlane.xlu0 %94
    %v96 = vsel %vm21, %v89, 0.0
    %97 = vadd.xlane.f32.xlu0 %v96
    %v98 = vpop.xlane.xlu0 %97
    %v99 = vsub.f32 %v92, %v50
    %v100 = vsub.f32 %v95, %v52
    %v101 = vsub.f32 %v98, %v54
    %v102 = vmul.f32 %v99, -0.8967742
    %v103 = vmul.f32 %v100, -0.8967742
    %v104 = vmul.f32 %v101, -0.8967742
    %v105 = vmul.f32 %v67, 0.0032258064
    %v106 = vmul.f32 %v68, 0.0032258064
    %v107 = vmul.f32 %v69, 0.0032258064
    %v108 = vsub.f32 %v102, %v105
    %v109 = vsub.f32 %v103, %v106
    %v110 = vsub.f32 %v104, %v107
    %v111 = vlaneseq
    %v112 = vshrl.u32 %v111, 7
    %v113 = vadd.s32 %v112, 8
    %v114 = vadd.s32 %v112, 16
    %s115 = smul.u32 0, 24
    %v116 = vstv %s115
    %v117 = vadd.s32 %v112, %v116
    %v118 = vadd.s32 %v113, %v116
    %v119 = vadd.s32 %v114, %v116
    %vm120 = vcmp.lt.s32.totalorder %v117, 20
    %vm121 = vcmp.lt.s32.totalorder %v118, 20
    %vm122 = vcmp.lt.s32.totalorder %v119, 20
    %v123 = vsel %vm120, %v108, 0.0
    %v124 = vsel %vm121, %v109, 0.0
    %v125 = vsel %vm122, %v110, 0.0
    %v126 = vld [vmem:[#allocation2] sm:$0x1]
    %vm127 = vcmask 7168
    %v128 = vsel %vm127, %v123, 0.0
    %v129 = vsel %vm127, %v124, 0.0
    %v130 = vadd.f32 %v128, %v129
    %v131 = vsel %vm127, %v125, 0.0
    %v132 = vadd.f32 %v130, %v131
    %133 = vadd.xlane.f32.xlu0 %v132
    %v134 = vpop.xlane.xlu0 %133
    %v135 = vrot.slane %v134, 4
    %v136 = vadd.f32 %v134, %v135
    %v137 = vrot.slane %v136, 2
    %v138 = vadd.f32 %v136, %v137
    %v139 = vrot.slane %v138, 1
    %v140 = vadd.f32 %v138, %v139
    %s141 = vtos %v140
    %v142 = vstv %s141
    %v143 = vadd.f32 %v126, %v142
    %vm144 = vcmask 0
    %145 = vst.msk [vmem:[#allocation2] sm:$0x1] %vm144, %v143
    // Predicated region
    $region14: #{tpu_custom_call.1} parent=1 // pred_check
      _
    $region15: #{tpu_custom_call.1} parent=1 // pred_check_branch
      %147 = sbr.rel (0) target = $region17
    $region16: #{tpu_custom_call.1} parent=1 // pred_region
      %s149 = ssub.s32 16, 16
      %150 = vsyncadd [#allocation3], %s149
      %s152 = sshll.u32 [#allocation2], 4
      %s153 = int_to_ptr.vmem [resolvable:$true] %s152
      %155 = dma.vmem_to_hbm [thread:$0]  %s153, 16, %s2, [#allocation3]
    $region17: #{tpu_custom_call.1} parent=1 // pred_fallthru
      _
    // Predicated region
    $region18: #{tpu_custom_call.1} parent=1 // pred_check
      _
    $region19: #{tpu_custom_call.1} parent=1 // pred_check_branch
      %157 = sbr.rel (0) target = $region21
    $region20: #{tpu_custom_call.1} parent=1 // pred_region
      %158 = dma.done [#allocation3], 16
    $region21: #{tpu_custom_call.1} parent=1 // pred_fallthru
      _
    %159 = vsyncpa [#allocation3], 1

</llo_original>
